<compile_context>
chip_gen: v7x
topology: tpu7x:2x2x1
jax: 0.10.0
libtpu: 0.0.40
codegen_flags: <defaults>
</compile_context>

<pallas_src>
import functools
import math

import jax
import jax.numpy as jnp
import numpy as np
from jax.experimental import pallas as pl
from jax.experimental.pallas import tpu as pltpu


# ---------------------------------------------------------------------------
# Kernel 1 & 3: batched matmul + bias (parallel over row blocks).
# ---------------------------------------------------------------------------
def _matmul_bias_kernel(x_ref, w_ref, b_ref, o_ref):
    """o = x @ w + b on one (block_rows, K) tile."""
    o_ref[...] = (
        jnp.dot(x_ref[...], w_ref[...], preferred_element_type=jnp.float32)
        + b_ref[...]
    ).astype(o_ref.dtype)


def _matmul_bias(x, w, b, *, block_rows=512):
    """x: (R, K), w: (K, N), b: (1, N) -> (R, N). Parallel over row blocks."""
    rows, k = x.shape
    n = w.shape[1]
    br = min(rows, block_rows)
    grid = (pl.cdiv(rows, br),)
    return pl.pallas_call(
        _matmul_bias_kernel,
        out_shape=jax.ShapeDtypeStruct((rows, n), jnp.float32),
        grid_spec=pltpu.PrefetchScalarGridSpec(
            num_scalar_prefetch=0,
            grid=grid,
            in_specs=[
                pl.BlockSpec((br, k), lambda i: (i, 0)),
                pl.BlockSpec((k, n), lambda i: (0, 0)),
                pl.BlockSpec((1, n), lambda i: (0, 0)),
            ],
            out_specs=pl.BlockSpec((br, n), lambda i: (i, 0)),
        ),
        compiler_params=pltpu.CompilerParams(
            dimension_semantics=("parallel",),
        ),
    )(x, w, b)


# ---------------------------------------------------------------------------
# Kernel 2: sequential GRU recurrence.  Per time step only h @ W_hh (one fused
# (B, H) x (H, 3H) matmul) plus the gate nonlinearities remain; the x-path
# gate pre-activations arrive precomputed as gates_x.
# ---------------------------------------------------------------------------
def _gru_recurrence_kernel(gx_ref, whh_ref, bhn_ref, hs_ref, h_ref,
                           *, hidden_size, block_t):
    """gx_ref : (block_t, B, 3H) precomputed x-path gates (+ folded biases)
       whh_ref: (H, 3H)          fused hidden weights [r | z | n]
       bhn_ref: (1, H)           hidden bias of the n gate (kept separate)
       hs_ref : (block_t, B, H)  output hidden states
       h_ref  : (B, H) VMEM      carried hidden state across grid steps
    """
    H = hidden_size

    @pl.when(pl.program_id(0) == 0)
    def _init():
        h_ref[...] = jnp.zeros_like(h_ref)

    # Invariant operands loaded once per block (outside the time loop).
    whh = whh_ref[...]     # (H, 3H)
    bhn = bhn_ref[...]     # (1, H)

    def step(t, h):
        gx = gx_ref[t]                                             # (B, 3H)
        gh = jnp.dot(h, whh, preferred_element_type=jnp.float32)   # (B, 3H)
        r = jax.nn.sigmoid(gx[:, :H] + gh[:, :H])
        z = jax.nn.sigmoid(gx[:, H:2 * H] + gh[:, H:2 * H])
        n = jnp.tanh(gx[:, 2 * H:] + r * (gh[:, 2 * H:] + bhn))
        h_new = (1.0 - z) * n + z * h
        hs_ref[t] = h_new.astype(hs_ref.dtype)
        return h_new

    h_ref[...] = jax.lax.fori_loop(0, block_t, step, h_ref[...], unroll=True)


def _largest_divisor_at_most(n, cap):
    for d in range(min(n, cap), 0, -1):
        if n % d == 0:
            return d
    return 1


def _gru_recurrence(gates_x, whh_f, b_hn, *, hidden_size):
    T, B, G = gates_x.shape
    H = hidden_size
    # Block the (sequential) time axis; whole sequence in one grid step when
    # it is small, otherwise up to 128 timesteps per step (divisor of T so the
    # carried hidden state never sees padded garbage timesteps).
    block_t = _largest_divisor_at_most(T, 128)
    kernel = functools.partial(
        _gru_recurrence_kernel, hidden_size=H, block_t=block_t)
    return pl.pallas_call(
        kernel,
        out_shape=jax.ShapeDtypeStruct((T, B, H), jnp.float32),
        grid_spec=pltpu.PrefetchScalarGridSpec(
            num_scalar_prefetch=0,
            grid=(T // block_t,),
            in_specs=[
                pl.BlockSpec((block_t, B, G), lambda i: (i, 0, 0)),
                pl.BlockSpec((H, G), lambda i: (0, 0)),
                pl.BlockSpec((1, H), lambda i: (0, 0)),
            ],
            out_specs=pl.BlockSpec((block_t, B, H), lambda i: (i, 0, 0)),
            scratch_shapes=[pltpu.VMEM((B, H), jnp.float32)],
        ),
        compiler_params=pltpu.CompilerParams(
            dimension_semantics=("arbitrary",),   # time is sequential
        ),
    )(gates_x, whh_f, b_hn)


# ---------------------------------------------------------------------------
# Parameter fusion (host side): PyTorch layout -> fused kernel layout.
# ---------------------------------------------------------------------------
def prepare_fused_params(params):
    wih, whh, bih, bhh = (
        params["wih"], params["whh"], params["bih"], params["bhh"])
    # Fused weights, gate order [r | z | n] along the last (lane) axis.
    wih_f = jnp.concatenate([wih[0], wih[1], wih[2]], axis=1)   # (I, 3H)
    whh_f = jnp.concatenate([whh[0], whh[1], whh[2]], axis=1)   # (H, 3H)
    # Fold hidden biases of r and z gates into the x-path bias; keep b_hn
    # separate (it sits inside r * (W_hn h + b_hn)).
    b_x = jnp.concatenate(
        [bih[0] + bhh[0], bih[1] + bhh[1], bih[2]], axis=1)      # (1, 3H)
    b_hn = bhh[2]                                                # (1, H)
    return wih_f, whh_f, b_x, b_hn


def encoder_forward(inp, params):
    """inp: (T, B, input_size) float32 -> (T, B, output_size) float32."""
    T, B, I = inp.shape
    wih_f, whh_f, b_x, b_hn = prepare_fused_params(params)
    wlin, blin = params["wlin"], params["blin"]
    H = whh_f.shape[0]
    O = wlin.shape[1]

    # Stage 1 (parallel): fused input projection for all gates & timesteps.
    gates_x = _matmul_bias(inp.reshape(T * B, I), wih_f, b_x)    # (T*B, 3H)
    gates_x = gates_x.reshape(T, B, 3 * H)

    # Stage 2 (sequential): GRU recurrence, only h @ W_hh on the critical path.
    hs = _gru_recurrence(gates_x, whh_f, b_hn, hidden_size=H)    # (T, B, H)

    # Stage 3 (parallel): output Linear over all timesteps at once.
    out = _matmul_bias(hs.reshape(T * B, H), wlin, blin)         # (T*B, O)
    return out.reshape(T, B, O)


# ---------------------------------------------------------------------------
# Parameter init (PyTorch-like layout/ranges) and pure-JAX reference.
# ---------------------------------------------------------------------------
def init_params(key, input_size, hidden_size, output_size):
    ks = jax.random.split(key, 6)
    k_gru = 1.0 / np.sqrt(hidden_size)
    k_lin = 1.0 / np.sqrt(hidden_size)

    # PyTorch stores weight_ih_l0 as (3H, I), gate order [r, z, n].
    # Stored here as (3, I, H): wih[g] == weight_ih_l0[g*H:(g+1)*H, :].T
    wih = jax.random.uniform(ks[0], (3, input_size, hidden_size),
                             minval=-k_gru, maxval=k_gru, dtype=jnp.float32)
    whh = jax.random.uniform(ks[1], (3, hidden_size, hidden_size),
                             minval=-k_gru, maxval=k_gru, dtype=jnp.float32)
    bih = jax.random.uniform(ks[2], (3, 1, hidden_size),
                             minval=-k_gru, maxval=k_gru, dtype=jnp.float32)
    bhh = jax.random.uniform(ks[3], (3, 1, hidden_size),
                             minval=-k_gru, maxval=k_gru, dtype=jnp.float32)
    wlin = jax.random.uniform(ks[4], (hidden_size, output_size),
                              minval=-k_lin, maxval=k_lin, dtype=jnp.float32)
    blin = jax.random.uniform(ks[5], (1, output_size),
                              minval=-k_lin, maxval=k_lin, dtype=jnp.float32)
    return {"wih": wih, "whh": whh, "bih": bih, "bhh": bhh,
            "wlin": wlin, "blin": blin}


def encoder_reference(inp, params):
    """Pure-JAX reference of nn.GRU(1 layer, h0=0) + nn.Linear."""
    wih, whh, bih, bhh, wlin, blin = (
        params["wih"], params["whh"], params["bih"], params["bhh"],
        params["wlin"], params["blin"])
    B = inp.shape[1]
    H = wih.shape[-1]

    def step(h, x):
        r = jax.nn.sigmoid(x @ wih[0] + bih[0] + h @ whh[0] + bhh[0])
        z = jax.nn.sigmoid(x @ wih[1] + bih[1] + h @ whh[1] + bhh[1])
        n = jnp.tanh(x @ wih[2] + bih[2] + r * (h @ whh[2] + bhh[2]))
        h_new = (1.0 - z) * n + z * h
        return h_new, h_new

    h0 = jnp.zeros((B, H), jnp.float32)
    _, hs = jax.lax.scan(step, h0, inp)
    return hs @ wlin + blin


if __name__ == "__main__":
    # Shapes consistent with the module's forward (seq-major, batch_first=False):
    # inp: (seq_len, batch, input_size) = (8, 2, 16); hidden=32; output=8.
    T, B, input_size, hidden_size, output_size = 8, 2, 16, 32, 8

    key = jax.random.PRNGKey(0)
    k_inp, k_par = jax.random.split(key)
    inp = jax.random.normal(k_inp, (T, B, input_size), dtype=jnp.float32)
    params = init_params(k_par, input_size, hidden_size, output_size)

    out = encoder_forward(inp, params)
    out = jax.block_until_ready(out)

    ref = jax.block_until_ready(encoder_reference(inp, params))
    np.testing.assert_allclose(np.asarray(out), np.asarray(ref),
                               rtol=1e-5, atol=1e-5)

    print("KERNEL_OK")
</pallas_src>

<mosaic_0001>
module attributes {stable_mosaic.version = 11 : i64} {
  func.func @_matmul_bias_kernel(%arg0: i32, %arg1: memref<16x16xf32, #tpu.memory_space<vmem>>, %arg2: memref<16x96xf32, #tpu.memory_space<vmem>>, %arg3: memref<1x96xf32, #tpu.memory_space<vmem>>, %arg4: memref<16x96xf32, #tpu.memory_space<vmem>>) attributes {dimension_semantics = [#tpu.dimension_semantics<parallel>], iteration_bounds = array<i64: 1>, scalar_prefetch = 0 : i64, scratch_operands = 0 : i64, tpu.core_type = #tpu.core_type<tc>, window_params = [{transform_indices = @transform_0, window_bounds = array<i64: 16, 16>}, {pipeline_mode = #tpu.pipeline_mode<synchronous>, transform_indices = @transform_1, window_bounds = array<i64: 16, 96>}, {pipeline_mode = #tpu.pipeline_mode<synchronous>, transform_indices = @transform_2, window_bounds = array<i64: 1, 96>}, {transform_indices = @transform_3, window_bounds = array<i64: 16, 96>}]} {
    %c0 = arith.constant 0 : index
    %c0_0 = arith.constant 0 : index
    %0 = vector.load %arg1[%c0, %c0_0] : memref<16x16xf32, #tpu.memory_space<vmem>>, vector<16x16xf32>
    %c0_1 = arith.constant 0 : index
    %c0_2 = arith.constant 0 : index
    %1 = vector.load %arg2[%c0_1, %c0_2] : memref<16x96xf32, #tpu.memory_space<vmem>>, vector<16x96xf32>
    %cst = arith.constant dense<0.000000e+00> : vector<16x96xf32>
    %2 = tpu.matmul %0, %1, %cst {dimension_numbers = #tpu.dot_dimension_numbers<[1], [0], [0], [1], [0, 0, 1, 1], [], []>} : vector<16x16xf32>, vector<16x96xf32>, vector<16x96xf32> -> vector<16x96xf32>
    %c0_3 = arith.constant 0 : index
    %c0_4 = arith.constant 0 : index
    %3 = vector.load %arg3[%c0_3, %c0_4] : memref<1x96xf32, #tpu.memory_space<vmem>>, vector<1x96xf32>
    %4 = vector.broadcast %3 : vector<1x96xf32> to vector<16x96xf32>
    %5 = arith.addf %2, %4 : vector<16x96xf32>
    %c0_5 = arith.constant 0 : index
    %c0_6 = arith.constant 0 : index
    %6 = vector.load %arg4[%c0_5, %c0_6] : memref<16x96xf32, #tpu.memory_space<vmem>>, vector<16x96xf32>
    tpu.vector_store %arg4[%c0_5, %c0_6], %5 {strides = array<i32>} : memref<16x96xf32, #tpu.memory_space<vmem>>, vector<16x96xf32>,
    return
  }
  func.func @transform_0(%arg0: i32) -> (i32, i32) {
    %c0_i32 = arith.constant 0 : i32
    %c0_i32_0 = arith.constant 0 : i32
    return %arg0, %c0_i32 : i32, i32
  }
  func.func @transform_1(%arg0: i32) -> (i32, i32) {
    %c0_i32 = arith.constant 0 : i32
    %c0_i32_0 = arith.constant 0 : i32
    %c0_i32_1 = arith.constant 0 : i32
    return %c0_i32, %c0_i32_0 : i32, i32
  }
  func.func @transform_2(%arg0: i32) -> (i32, i32) {
    %c0_i32 = arith.constant 0 : i32
    %c0_i32_0 = arith.constant 0 : i32
    %c0_i32_1 = arith.constant 0 : i32
    return %c0_i32, %c0_i32_0 : i32, i32
  }
  func.func @transform_3(%arg0: i32) -> (i32, i32) {
    %c0_i32 = arith.constant 0 : i32
    %c0_i32_0 = arith.constant 0 : i32
    return %arg0, %c0_i32 : i32, i32
  }
}

</mosaic_0001>

<llo_original>
// kernel: tpu_custom_call.1
$region0: #{tpu_custom_call.1}
  #allocation0 [shape = 'u32[]', space=smem, size = 0x4, offset = 0x4, fixed_abs, tag = 'smem constant byte address 0x4 - core index']
  #allocation1 [shape = 'u32[144,128]{1,0:T(1,128)}', space=vmem, size = 0x12000, scoped, tag = 'internal scratch']
  %s0 = inlined_call_operand.hbm [shape: f32[16,16], index: 0, kind: input, shape index: {}]
  %s1 = inlined_call_operand.hbm [shape: f32[16,96], index: 1, kind: input, shape index: {}]
  %s2 = inlined_call_operand.vmem [shape: f32[1,96], index: 2, kind: input, shape index: {}]
  %s3 = inlined_call_operand.hbm [shape: f32[16,96], index: 3, kind: output, shape index: {}]
  %s4 = sld [smem:[#allocation0]]
  $region30: #{tpu_custom_call.1} parent=0
    _
  %s6 = ssub.s32 1, %s4
  %s7 = scalar_select 0, %s6, %s4
  $region1: #{tpu_custom_call.1} parent=0
    #allocation2 [shape = 'u8[8192]{0}', space=vmem, size = 0x2000, scoped, tag = 'input window, operand 0, single buffered']
    #allocation3 [shape = 's32[1]{0}', space=sflag, size = 0x4, scoped, tag = 'scoped memory for tpu_custom_call.1']
    #allocation4 [shape = 's32[1]{0}', space=sflag, size = 0x4, scoped, tag = 'scoped memory for tpu_custom_call.1']
    #allocation5 [shape = 'u8[8192]{0}', space=vmem, size = 0x2000, scoped, tag = 'input window, operand 1, single buffered']
    #allocation6 [shape = 's32[1]{0}', space=sflag, size = 0x4, scoped, tag = 'scoped memory for tpu_custom_call.1']
    #allocation7 [shape = 'u8[8192]{0}', space=vmem, size = 0x2000, scoped, tag = 'output window, operand 0, single buffered']
    %8 = vsyncpa [#allocation3], 0
    %9 = vsyncpa [#allocation6], 0
    %10 = vsyncpa [#allocation4], 0
    // Predicated region
    $region2: #{tpu_custom_call.1} parent=1 // pred_check
      _
    $region3: #{tpu_custom_call.1} parent=1 // pred_check_branch
      %12 = sbr.rel (0) target = $region5
    $region4: #{tpu_custom_call.1} parent=1 // pred_region
      %s14 = ssub.s32 256, 256
      %15 = vsyncadd [#allocation3], %s14
      %s16 = sshll.u32 [#allocation2], 4
      %s17 = int_to_ptr.vmem [resolvable:$true] %s16
      %22 = dma.hbm_to_vmem [thread:$0]  %s0, 256, %s17, [#allocation3], 128, 128, 8
    $region5: #{tpu_custom_call.1} parent=1 // pred_fallthru
      _
    // Predicated region
    $region6: #{tpu_custom_call.1} parent=1 // pred_check
      _
    $region7: #{tpu_custom_call.1} parent=1 // pred_check_branch
      %24 = sbr.rel (0) target = $region9
    $region8: #{tpu_custom_call.1} parent=1 // pred_region
      %s26 = ssub.s32 256, 256
      %27 = vsyncadd [#allocation6], %s26
      %s28 = sshll.u32 [#allocation5], 4
      %s29 = int_to_ptr.vmem [resolvable:$true] %s28
      %34 = dma.hbm_to_vmem [thread:$0]  %s1, 256, %s29, [#allocation6], 128, 128, 8
    $region9: #{tpu_custom_call.1} parent=1 // pred_fallthru
      _
    // Predicated region
    $region10: #{tpu_custom_call.1} parent=1 // pred_check
      _
    $region11: #{tpu_custom_call.1} parent=1 // pred_check_branch
      %36 = sbr.rel (0) target = $region13
    $region12: #{tpu_custom_call.1} parent=1 // pred_region
      _
    $region13: #{tpu_custom_call.1} parent=1 // pred_fallthru
      _
    // Predicated region
    $region14: #{tpu_custom_call.1} parent=1 // pred_check
      _
    $region15: #{tpu_custom_call.1} parent=1 // pred_check_branch
      %38 = sbr.rel (0) target = $region17
    $region16: #{tpu_custom_call.1} parent=1 // pred_region
      %39 = dma.done [#allocation3], 256
    $region17: #{tpu_custom_call.1} parent=1 // pred_fallthru
      _
    // Predicated region
    $region18: #{tpu_custom_call.1} parent=1 // pred_check
      _
    $region19: #{tpu_custom_call.1} parent=1 // pred_check_branch
      %41 = sbr.rel (0) target = $region21
    $region20: #{tpu_custom_call.1} parent=1 // pred_region
      %42 = dma.done [#allocation6], 256
    $region21: #{tpu_custom_call.1} parent=1 // pred_fallthru
      _
    %v43 = vld [vmem:[#allocation2] sm:$0xff]
    %v44 = vld [vmem:[#allocation2 + $0x8] sm:$0xff]
    %v45 = vld [vmem:[#allocation5] sm:$0xff]
    %v46 = vld [vmem:[#allocation5 + $0x8] sm:$0xff]
    %v47 = vld [vmem:[%s2] sm:$0x1]
    %v49 = vlaneseq
    %v50 = vshrl.u32 %v49, 7
    %v51 = vsub.s32 0, %v50
    %v52 = vrot.slane %v47, %v51
    %vm54 = vcmask 130048
    %v56 = vsel %vm54, %v43, 0
    %v59 = vsel %vm54, %v44, 0
    %61 = vmatprep.subr.mxu0 0.0
    %62 = vmatpush1.msra.mxu0 %v45
    %63 = vmatprep.subr.mxu0 0.0
    %64 = vmatpush1.msra.mxu0 %v46
    %65 = vmatprep.subr.mxu0 0.0
    %66 = vmatpush1.msra.mxu0 0.0
    %67 = vmatprep.subr.mxu0 0.0
    %68 = vmatpush1.msra.mxu0 0.0
    %69 = vmatprep.subr.mxu0 0.0
    %70 = vmatpush1.msra.mxu0 0.0
    %71 = vmatprep.subr.mxu0 0.0
    %72 = vmatpush1.msra.mxu0 0.0
    %73 = vmatprep.subr.mxu0 0.0
    %74 = vmatpush1.msra.mxu0 0.0
    %75 = vmatprep.subr.mxu0 0.0
    %76 = vmatpush1.msra.mxu0 0.0
    %77 = vmatprep.subr.mxu0 0.0
    %78 = vmatpush1.msra.mxu0 0.0
    %79 = vmatprep.subr.mxu0 0.0
    %80 = vmatpush1.msra.mxu0 0.0
    %81 = vmatprep.subr.mxu0 0.0
    %82 = vmatpush1.msra.mxu0 0.0
    %83 = vmatprep.subr.mxu0 0.0
    %84 = vmatpush1.msra.mxu0 0.0
    %85 = vmatprep.subr.mxu0 0.0
    %86 = vmatpush1.msra.mxu0 0.0
    %87 = vmatprep.subr.mxu0 0.0
    %88 = vmatpush1.msra.mxu0 0.0
    %89 = vmatprep.subr.mxu0 0.0
    %90 = vmatpush1.msra.mxu0 0.0
    %91 = vmatprep.subr.mxu0 0.0
    %92 = vmatpush1.msra.mxu0 0.0
    %93 = vmatprep.subr.mxu0 0.0
    %94 = vmatpush1.msra.mxu0 0.0
    %95 = vmatprep.subr.mxu0 0.0
    %96 = vmatpush1.msra.mxu0 0.0
    %97 = vmatprep.subr.mxu0 0.0
    %98 = vmatpush1.msra.mxu0 0.0
    %99 = vmatprep.subr.mxu0 0.0
    %100 = vmatpush1.msra.mxu0 0.0
    %101 = vmatprep.subr.mxu0 0.0
    %102 = vmatpush1.msra.mxu0 0.0
    %103 = vmatprep.subr.mxu0 0.0
    %104 = vmatpush1.msra.mxu0 0.0
    %105 = vmatprep.subr.mxu0 0.0
    %106 = vmatpush1.msra.mxu0 0.0
    %107 = vmatprep.subr.mxu0 0.0
    %108 = vmatpush1.msra.mxu0 0.0
    %109 = vmatprep.subr.mxu0 0.0
    %110 = vmatpush1.msra.mxu0 0.0
    %111 = vmatprep.subr.mxu0 0.0
    %112 = vmatpush1.msra.mxu0 0.0
    %113 = vmatprep.subr.mxu0 0.0
    %114 = vmatpush1.msra.mxu0 0.0
    %115 = vmatprep.subr.mxu0 0.0
    %116 = vmatpush1.msra.mxu0 0.0
    %117 = vmatprep.subr.mxu0 0.0
    %118 = vmatpush1.msra.mxu0 0.0
    %119 = vmatprep.subr.mxu0 0.0
    %120 = vmatpush1.msra.mxu0 0.0
    %121 = vmatprep.subr.mxu0 0.0
    %122 = vmatpush1.msra.mxu0 0.0
    %123 = vmatprep.subr.mxu0 0.0
    %124 = vmatpush1.msra.mxu0 0.0
    %125 = vmatprep.mubr.f32.mxu0 0.0
    %126 = vmatmul.mubr.f32.gmra.mrb[0].mxu0 %v56
    %v127 = vpop.f32.mrb[0].mxu0
    %v128 = vadd.f32 %v52, %v127
    %v129 = vpop.f32.mrb[0].mxu0
    %130 = vmatprep.mubr.f32.mxu0 0.0
    %131 = vmatmul.mubr.f32.gmra.mrb[0].mxu0 %v59
    %v132 = vpop.f32.mrb[0].mxu0
    %v133 = vadd.f32 %v52, %v132
    %v134 = vpop.f32.mrb[0].mxu0
    %135 = vdwg.mxu0
    %vm136 = vcmask 785408
    %137 = vst.msk [vmem:[#allocation7] sm:$0xff] %vm136, %v128
    %138 = vst.msk [vmem:[#allocation7 + $0x8] sm:$0xff] %vm136, %v133
    // Predicated region
    $region22: #{tpu_custom_call.1} parent=1 // pred_check
      _
    $region23: #{tpu_custom_call.1} parent=1 // pred_check_branch
      %140 = sbr.rel (0) target = $region25
    $region24: #{tpu_custom_call.1} parent=1 // pred_region
      %s142 = ssub.s32 256, 256
      %143 = vsyncadd [#allocation4], %s142
      %s144 = sshll.u32 [#allocation7], 4
      %s145 = int_to_ptr.vmem [resolvable:$true] %s144
      %150 = dma.vmem_to_hbm [thread:$0]  %s145, 256, %s3, [#allocation4], 128, 128, 8
    $region25: #{tpu_custom_call.1} parent=1 // pred_fallthru
      _
    // Predicated region
    $region26: #{tpu_custom_call.1} parent=1 // pred_check
      _
    $region27: #{tpu_custom_call.1} parent=1 // pred_check_branch
      %152 = sbr.rel (0) target = $region29
    $region28: #{tpu_custom_call.1} parent=1 // pred_region
      %153 = dma.done [#allocation4], 256
    $region29: #{tpu_custom_call.1} parent=1 // pred_fallthru
      _
    %154 = vsyncpa [#allocation3], 1
    %155 = vsyncpa [#allocation6], 1
    %156 = vsyncpa [#allocation4], 1

</llo_original>
